<compile_context>
chip_gen: v6e
topology: v6e:2x2x1
jax: 0.10.0
libtpu: 0.0.40
codegen_flags: <defaults>
</compile_context>

<pallas_src>
import math

import jax
import jax.numpy as jnp
from jax.experimental import pallas as pl
from jax.experimental.pallas import tpu as pltpu

_LANES = 128
_TARGET_BLOCK_BYTES = 4 << 20      # ~4 MiB output block: step overhead <~15% of DMA
_MAX_PACK = 16                     # cap on batch rows packed per output row
_DEFAULT_MIN_PALLAS_BATCH = 1024   # below this, fused XLA beats a pallas_call


def _make_kernel(pack: int):
    """Kernel over one (tile_rows, out_cols) output block.

    t_ref    : (tile_rows, pack) f32 timesteps (pack batch elements per row)
    freq_ref : (pack, out_cols)  f32 block-diagonal frequency rows (disjoint lanes)
    phase_ref: (1, out_cols)     f32; 0 on sin lanes, pi/2 on cos lanes
    out_ref  : (tile_rows, out_cols)
    """

    def kernel(t_ref, freq_ref, phase_ref, out_ref):
        t = t_ref[...]                        # (TB, pack)
        freqs = freq_ref[...]                 # (pack, out_cols)
        # Build the full lane-dense argument row in one shot.  Each packed
        # batch element contributes on a disjoint set of lanes (the freq rows
        # are block-diagonal), so the sum is an exact select: no concat, no
        # where, pure VPU broadcasts/mul/add on full 128-lane vregs.
        acc = t[:, 0:1] * freqs[0:1, :]       # (TB,1)*(1,out_cols) broadcast
        for g in range(1, pack):
            acc = acc + t[:, g:g + 1] * freqs[g:g + 1, :]
        # cos(x) == sin(x + pi/2): one EUP transcendental per element.
        out_ref[...] = jnp.sin(acc + phase_ref[...]).astype(out_ref.dtype)

    return kernel


def sinusoidal_position_embeddings(time: jax.Array, dim: int, *,
                                   out_dtype=jnp.float32,
                                   block_rows: int | None = None,
                                   min_pallas_batch: int = _DEFAULT_MIN_PALLAS_BATCH
                                   ) -> jax.Array:
    """time: (B,) -> (B, dim); columns [0:dim//2)=sin, [dim//2:dim)=cos."""
    assert time.ndim == 1
    assert dim % 2 == 0 and dim >= 4, "dim must be even and >= 4"
    half = dim // 2
    b = time.shape[0]

    scale = math.log(10000.0) / (half - 1)
    freq_half = jnp.exp(jnp.arange(half, dtype=jnp.float32) * -scale)   # (half,)
    t32 = time.astype(jnp.float32)

    # Small-batch fallback: let XLA fuse the trivial expression with its consumer.
    if b < min_pallas_batch:
        args = t32[:, None] * freq_half[None, :]
        return jnp.concatenate([jnp.sin(args), jnp.cos(args)], axis=-1).astype(out_dtype)

    freq_row = jnp.concatenate([freq_half, freq_half])                   # (dim,)
    phase_row = jnp.concatenate([jnp.zeros((half,), jnp.float32),
                                 jnp.full((half,), 0.5 * math.pi, jnp.float32)])

    # ---- lane-dense packing: out_cols is always a multiple of 128 ------------
    pack = _LANES // math.gcd(dim, _LANES)        # = lcm(dim,128)//dim
    if pack <= _MAX_PACK:
        out_cols = pack * dim
        pad_cols = 0
    else:                                          # awkward dim: pad lanes instead
        pack = 1
        out_cols = ((dim + _LANES - 1) // _LANES) * _LANES
        pad_cols = out_cols - dim

    if pad_cols:
        freq_row = jnp.pad(freq_row, (0, pad_cols))     # padded lanes: freq=0
        phase_row = jnp.pad(phase_row, (0, pad_cols))   # -> sin(0)=0, sliced off

    if pack > 1:
        # block-diagonal (pack, out_cols): row g carries freq_row on lanes
        # [g*dim, (g+1)*dim) and zeros elsewhere.
        freq_mat = (jnp.eye(pack, dtype=jnp.float32)[:, :, None]
                    * freq_row.reshape(1, 1, dim)).reshape(pack, out_cols)
    else:
        freq_mat = freq_row.reshape(1, out_cols)
    phase = jnp.tile(phase_row, pack).reshape(1, out_cols)

    # ---- row tiling -----------------------------------------------------------
    rows = pl.cdiv(b, pack)
    out_itemsize = jnp.dtype(out_dtype).itemsize
    if block_rows is None:
        block_rows = max(8, _TARGET_BLOCK_BYTES // (out_cols * out_itemsize))
    if rows <= block_rows:
        tile_rows = rows                       # single full-array block
        grid_steps = 1
    else:
        tile_rows = max(8, (int(block_rows) // 8) * 8)   # sublane-aligned tiles
        grid_steps = pl.cdiv(rows, tile_rows)
    rows_padded = grid_steps * tile_rows       # pad so every block is full/unmasked
    b_padded = rows_padded * pack
    if b_padded != b:
        t32 = jnp.pad(t32, (0, b_padded - b))
    t2 = t32.reshape(rows_padded, pack)

    out = pl.pallas_call(
        _make_kernel(pack),
        out_shape=jax.ShapeDtypeStruct((rows_padded, out_cols), out_dtype),
        grid=(grid_steps,),
        in_specs=[
            pl.BlockSpec((tile_rows, pack), lambda i: (i, 0)),     # timesteps
            pl.BlockSpec((pack, out_cols), lambda i: (0, 0)),      # freq rows (const)
            pl.BlockSpec((1, out_cols), lambda i: (0, 0)),         # phase row (const)
        ],
        out_specs=pl.BlockSpec((tile_rows, out_cols), lambda i: (i, 0)),
        compiler_params=pltpu.CompilerParams(
            dimension_semantics=("parallel",),                     # megacore-shardable
        ),
    )(t2, freq_mat, phase)

    if pad_cols:
        out = out[:, :dim]
    if pack > 1:
        out = out.reshape(rows_padded * pack, dim)
    return out[:b]


def _reference(time: jax.Array, dim: int) -> jax.Array:
    half_dim = dim // 2
    emb = math.log(10000.0) / (half_dim - 1)
    freqs = jnp.exp(jnp.arange(half_dim, dtype=jnp.float32) * -emb)
    args = time[:, None].astype(jnp.float32) * freqs[None, :]
    return jnp.concatenate([jnp.sin(args), jnp.cos(args)], axis=-1)


if __name__ == "__main__":
    key = jax.random.PRNGKey(0)
    # cos computed as sin(x + pi/2): relaxed atol (still catches real bugs, which
    # would produce O(1) errors).
    tol = dict(atol=2e-3, rtol=0.0)

    # 1) primary ddpm config (B=8, dim=32), forced through the Pallas path
    time1 = jax.random.uniform(key, (8,), jnp.float32, 0.0, 1000.0)
    out1 = jax.block_until_ready(
        sinusoidal_position_embeddings(time1, 32, min_pallas_batch=0))
    assert out1.shape == (8, 32)
    assert jnp.allclose(out1, _reference(time1, 32), **tol), "mismatch (dim=32 pallas)"

    # 1b) same inputs through the default small-batch fused-XLA fallback
    out1b = jax.block_until_ready(sinusoidal_position_embeddings(time1, 32))
    assert jnp.allclose(out1b, _reference(time1, 32), atol=1e-5, rtol=1e-5), \
        "mismatch (fallback)"

    # 2) multi-step grid + ragged batch padded to the tile (B=600, block_rows=16)
    k2 = jax.random.fold_in(key, 1)
    time2 = jax.random.uniform(k2, (600,), jnp.float32, 0.0, 1000.0)
    out2 = jax.block_until_ready(
        sinusoidal_position_embeddings(time2, 32, min_pallas_batch=0, block_rows=16))
    assert out2.shape == (600, 32)
    assert jnp.allclose(out2, _reference(time2, 32), **tol), "mismatch (multi-block)"

    # 3) dim not dividing 128 but lcm-packable (dim=96 -> 384 lanes, pack=4)
    k3 = jax.random.fold_in(key, 2)
    time3 = jax.random.uniform(k3, (37,), jnp.float32, 0.0, 1000.0)
    out3 = jax.block_until_ready(
        sinusoidal_position_embeddings(time3, 96, min_pallas_batch=0))
    assert out3.shape == (37, 96)
    assert jnp.allclose(out3, _reference(time3, 96), **tol), "mismatch (dim=96)"

    # 4) awkward dim (pack cap exceeded) -> padded-lane path (dim=20 -> 128 lanes)
    k4 = jax.random.fold_in(key, 3)
    time4 = jax.random.uniform(k4, (11,), jnp.float32, 0.0, 1000.0)
    out4 = jax.block_until_ready(
        sinusoidal_position_embeddings(time4, 20, min_pallas_batch=0))
    assert out4.shape == (11, 20)
    assert jnp.allclose(out4, _reference(time4, 20), **tol), "mismatch (dim=20)"

    # 5) bf16 output option (writeback-bound lever); f32 compute, bf16 store
    out5 = jax.block_until_ready(
        sinusoidal_position_embeddings(time2, 32, min_pallas_batch=0,
                                       out_dtype=jnp.bfloat16))
    assert out5.dtype == jnp.bfloat16
    assert jnp.allclose(out5.astype(jnp.float32), _reference(time2, 32),
                        atol=1e-2, rtol=0.0), "mismatch (bf16 out)"

    print("KERNEL_OK")
</pallas_src>

<mosaic_0001>
module attributes {stable_mosaic.version = 11 : i64} {
  func.func @kernel(%arg0: i32, %arg1: memref<2x4xf32, #tpu.memory_space<vmem>>, %arg2: memref<4x128xf32, #tpu.memory_space<vmem>>, %arg3: memref<1x128xf32, #tpu.memory_space<vmem>>, %arg4: memref<2x128xf32, #tpu.memory_space<vmem>>) attributes {dimension_semantics = [#tpu.dimension_semantics<parallel>], iteration_bounds = array<i64: 1>, scalar_prefetch = 0 : i64, scratch_operands = 0 : i64, tpu.core_type = #tpu.core_type<tc>, window_params = [{transform_indices = @transform_0, window_bounds = array<i64: 2, 4>}, {pipeline_mode = #tpu.pipeline_mode<synchronous>, transform_indices = @transform_1, window_bounds = array<i64: 4, 128>}, {pipeline_mode = #tpu.pipeline_mode<synchronous>, transform_indices = @transform_2, window_bounds = array<i64: 1, 128>}, {transform_indices = @transform_3, window_bounds = array<i64: 2, 128>}]} {
    %c0 = arith.constant 0 : index
    %c0_0 = arith.constant 0 : index
    %0 = vector.load %arg1[%c0, %c0_0] : memref<2x4xf32, #tpu.memory_space<vmem>>, vector<2x4xf32>
    %c0_1 = arith.constant 0 : index
    %c0_2 = arith.constant 0 : index
    %1 = vector.load %arg2[%c0_1, %c0_2] : memref<4x128xf32, #tpu.memory_space<vmem>>, vector<4x128xf32>
    %2 = vector.extract_strided_slice %0 {offsets = [0, 0], sizes = [2, 1], strides = [1, 1]} : vector<2x4xf32> to vector<2x1xf32>
    %3 = vector.extract_strided_slice %1 {offsets = [0, 0], sizes = [1, 128], strides = [1, 1]} : vector<4x128xf32> to vector<1x128xf32>
    %4 = vector.broadcast %2 : vector<2x1xf32> to vector<2x128xf32>
    %5 = vector.broadcast %3 : vector<1x128xf32> to vector<2x128xf32>
    %6 = arith.mulf %4, %5 : vector<2x128xf32>
    %7 = vector.extract_strided_slice %0 {offsets = [0, 1], sizes = [2, 1], strides = [1, 1]} : vector<2x4xf32> to vector<2x1xf32>
    %8 = vector.extract_strided_slice %1 {offsets = [1, 0], sizes = [1, 128], strides = [1, 1]} : vector<4x128xf32> to vector<1x128xf32>
    %9 = vector.broadcast %7 : vector<2x1xf32> to vector<2x128xf32>
    %10 = vector.broadcast %8 : vector<1x128xf32> to vector<2x128xf32>
    %11 = arith.mulf %9, %10 : vector<2x128xf32>
    %12 = arith.addf %6, %11 : vector<2x128xf32>
    %13 = vector.extract_strided_slice %0 {offsets = [0, 2], sizes = [2, 1], strides = [1, 1]} : vector<2x4xf32> to vector<2x1xf32>
    %14 = vector.extract_strided_slice %1 {offsets = [2, 0], sizes = [1, 128], strides = [1, 1]} : vector<4x128xf32> to vector<1x128xf32>
    %15 = vector.broadcast %13 : vector<2x1xf32> to vector<2x128xf32>
    %16 = vector.broadcast %14 : vector<1x128xf32> to vector<2x128xf32>
    %17 = arith.mulf %15, %16 : vector<2x128xf32>
    %18 = arith.addf %12, %17 : vector<2x128xf32>
    %19 = vector.extract_strided_slice %0 {offsets = [0, 3], sizes = [2, 1], strides = [1, 1]} : vector<2x4xf32> to vector<2x1xf32>
    %20 = vector.extract_strided_slice %1 {offsets = [3, 0], sizes = [1, 128], strides = [1, 1]} : vector<4x128xf32> to vector<1x128xf32>
    %21 = vector.broadcast %19 : vector<2x1xf32> to vector<2x128xf32>
    %22 = vector.broadcast %20 : vector<1x128xf32> to vector<2x128xf32>
    %23 = arith.mulf %21, %22 : vector<2x128xf32>
    %24 = arith.addf %18, %23 : vector<2x128xf32>
    %c0_3 = arith.constant 0 : index
    %c0_4 = arith.constant 0 : index
    %25 = vector.load %arg3[%c0_3, %c0_4] : memref<1x128xf32, #tpu.memory_space<vmem>>, vector<1x128xf32>
    %26 = vector.broadcast %25 : vector<1x128xf32> to vector<2x128xf32>
    %27 = arith.addf %24, %26 : vector<2x128xf32>
    %28 = math.sin %27 : vector<2x128xf32>
    %c0_5 = arith.constant 0 : index
    %c0_6 = arith.constant 0 : index
    %29 = vector.load %arg4[%c0_5, %c0_6] : memref<2x128xf32, #tpu.memory_space<vmem>>, vector<2x128xf32>
    tpu.vector_store %arg4[%c0_5, %c0_6], %28 {strides = array<i32>} : memref<2x128xf32, #tpu.memory_space<vmem>>, vector<2x128xf32>,
    return
  }
  func.func @transform_0(%arg0: i32) -> (i32, i32) {
    %c0_i32 = arith.constant 0 : i32
    %c0_i32_0 = arith.constant 0 : i32
    return %arg0, %c0_i32 : i32, i32
  }
  func.func @transform_1(%arg0: i32) -> (i32, i32) {
    %c0_i32 = arith.constant 0 : i32
    %c0_i32_0 = arith.constant 0 : i32
    %c0_i32_1 = arith.constant 0 : i32
    return %c0_i32, %c0_i32_0 : i32, i32
  }
  func.func @transform_2(%arg0: i32) -> (i32, i32) {
    %c0_i32 = arith.constant 0 : i32
    %c0_i32_0 = arith.constant 0 : i32
    %c0_i32_1 = arith.constant 0 : i32
    return %c0_i32, %c0_i32_0 : i32, i32
  }
  func.func @transform_3(%arg0: i32) -> (i32, i32) {
    %c0_i32 = arith.constant 0 : i32
    %c0_i32_0 = arith.constant 0 : i32
    return %arg0, %c0_i32 : i32, i32
  }
}

</mosaic_0001>

<llo_original>
// kernel: tpu_custom_call.1
$region0: #{tpu_custom_call.1}
  #allocation0 [shape = 'u32[]', space=smem, size = 0x4, offset = 0x4, fixed_abs, tag = 'smem constant byte address 0x4 - core index']
  #allocation1 [shape = 'u32[144,128]{1,0:T(1,128)}', space=vmem, size = 0x12000, scoped, tag = 'internal scratch']
  %s0 = inlined_call_operand.hbm [shape: f32[2,4], index: 0, kind: input, shape index: {}]
  %s1 = inlined_call_operand.hbm [shape: f32[4,128], index: 1, kind: input, shape index: {}]
  %s2 = inlined_call_operand.vmem [shape: f32[1,128], index: 2, kind: input, shape index: {}]
  %s3 = inlined_call_operand.hbm [shape: f32[2,128], index: 3, kind: output, shape index: {}]
  %s4 = sld [smem:[#allocation0]]
  $region30: #{tpu_custom_call.1} parent=0
    _
  %s6 = ssub.s32 1, %s4
  %s7 = scalar_select 0, %s6, %s4
  $region1: #{tpu_custom_call.1} parent=0
    #allocation2 [shape = 'u8[1024]{0}', space=vmem, size = 0x400, scoped, tag = 'input window, operand 0, single buffered']
    #allocation3 [shape = 's32[1]{0}', space=sflag, size = 0x4, scoped, tag = 'scoped memory for tpu_custom_call.1']
    #allocation4 [shape = 's32[1]{0}', space=sflag, size = 0x4, scoped, tag = 'scoped memory for tpu_custom_call.1']
    #allocation5 [shape = 'u8[2048]{0}', space=vmem, size = 0x800, scoped, tag = 'input window, operand 1, single buffered']
    #allocation6 [shape = 's32[1]{0}', space=sflag, size = 0x4, scoped, tag = 'scoped memory for tpu_custom_call.1']
    #allocation7 [shape = 'u8[1024]{0}', space=vmem, size = 0x400, scoped, tag = 'output window, operand 0, single buffered']
    %8 = vsyncpa [#allocation3], 0
    %9 = vsyncpa [#allocation6], 0
    %10 = vsyncpa [#allocation4], 0
    // Predicated region
    $region2: #{tpu_custom_call.1} parent=1 // pred_check
      _
    $region3: #{tpu_custom_call.1} parent=1 // pred_check_branch
      %12 = sbr.rel (0) target = $region5
    $region4: #{tpu_custom_call.1} parent=1 // pred_region
      %s14 = ssub.s32 32, 32
      %15 = vsyncadd [#allocation3], %s14
      %s17 = sshll.u32 [#allocation2], 4
      %s18 = int_to_ptr.vmem [resolvable:$true] %s17
      %20 = dma.hbm_to_vmem [thread:$0]  %s0, 32, %s18, [#allocation3]
    $region5: #{tpu_custom_call.1} parent=1 // pred_fallthru
      _
    // Predicated region
    $region6: #{tpu_custom_call.1} parent=1 // pred_check
      _
    $region7: #{tpu_custom_call.1} parent=1 // pred_check_branch
      %22 = sbr.rel (0) target = $region9
    $region8: #{tpu_custom_call.1} parent=1 // pred_region
      %s24 = ssub.s32 64, 64
      %25 = vsyncadd [#allocation6], %s24
      %s27 = sshll.u32 [#allocation5], 4
      %s28 = int_to_ptr.vmem [resolvable:$true] %s27
      %30 = dma.hbm_to_vmem [thread:$0]  %s1, 64, %s28, [#allocation6]
    $region9: #{tpu_custom_call.1} parent=1 // pred_fallthru
      _
    // Predicated region
    $region10: #{tpu_custom_call.1} parent=1 // pred_check
      _
    $region11: #{tpu_custom_call.1} parent=1 // pred_check_branch
      %32 = sbr.rel (0) target = $region13
    $region12: #{tpu_custom_call.1} parent=1 // pred_region
      _
    $region13: #{tpu_custom_call.1} parent=1 // pred_fallthru
      _
    // Predicated region
    $region14: #{tpu_custom_call.1} parent=1 // pred_check
      _
    $region15: #{tpu_custom_call.1} parent=1 // pred_check_branch
      %34 = sbr.rel (0) target = $region17
    $region16: #{tpu_custom_call.1} parent=1 // pred_region
      %35 = dma.done [#allocation3], 32
    $region17: #{tpu_custom_call.1} parent=1 // pred_fallthru
      _
    // Predicated region
    $region18: #{tpu_custom_call.1} parent=1 // pred_check
      _
    $region19: #{tpu_custom_call.1} parent=1 // pred_check_branch
      %37 = sbr.rel (0) target = $region21
    $region20: #{tpu_custom_call.1} parent=1 // pred_region
      %38 = dma.done [#allocation6], 64
    $region21: #{tpu_custom_call.1} parent=1 // pred_fallthru
      _
    %v39 = vld [vmem:[#allocation2] sm:$0x3]
    %v40 = vld [vmem:[#allocation5] sm:$0xf]
    %42 = vset.pattern.permute.xlu0 0
    %43 = vperm.xlu0 %42, %v39
    %v44 = vpop.permute.xlu0 %43
    %v46 = vlaneseq
    %v47 = vshrl.u32 %v46, 7
    %v48 = vsub.s32 0, %v47
    %v49 = vrot.slane %v40, %v48
    %v50 = vmul.f32 %v44, %v49
    %51 = vset.pattern.permute.xlu0 1
    %52 = vperm.xlu0 %51, %v39
    %v53 = vpop.permute.xlu0 %52
    %v55 = vlaneseq
    %v56 = vshrl.u32 %v55, 7
    %v57 = vsub.s32 1, %v56
    %v58 = vrot.slane %v40, %v57
    %v59 = vmul.f32 %v53, %v58
    %v60 = vadd.f32 %v50, %v59
    %61 = vset.pattern.permute.xlu0 2
    %62 = vperm.xlu0 %61, %v39
    %v63 = vpop.permute.xlu0 %62
    %v65 = vlaneseq
    %v66 = vshrl.u32 %v65, 7
    %v67 = vsub.s32 2, %v66
    %v68 = vrot.slane %v40, %v67
    %v69 = vmul.f32 %v63, %v68
    %v70 = vadd.f32 %v60, %v69
    %71 = vset.pattern.permute.xlu0 3
    %72 = vperm.xlu0 %71, %v39
    %v73 = vpop.permute.xlu0 %72
    %v75 = vlaneseq
    %v76 = vshrl.u32 %v75, 7
    %v77 = vsub.s32 3, %v76
    %v78 = vrot.slane %v40, %v77
    %v79 = vmul.f32 %v73, %v78
    %v80 = vadd.f32 %v70, %v79
    %v81 = vld [vmem:[%s2] sm:$0x1]
    %v83 = vlaneseq
    %v84 = vshrl.u32 %v83, 7
    %v85 = vsub.s32 0, %v84
    %v86 = vrot.slane %v81, %v85
    %v88 = vadd.f32 %v80, %v86
    %v89 = vand.u32 2147483647, %v88
    %vm90 = vcmp.le.f32.partialorder %v89, 0.7853982
    %vm91 = vcmp.lt.s32.totalorder %v88, 0
    %v92 = vand.u32 %v88, 2139095040
    %v93 = vshrl.u32 %v92, 23
    %v94 = vsub.s32 %v93, 127
    %v95 = vand.u32 2147483647, %v88
    %v96 = vand.u32 %v95, 8388607
    %v97 = vor.u32 %v96, 8388608
    %v98 = vsub.s32 0, %v97
    %v99 = vadd.s32 %v94, 1
    %vm100 = vcmp.gt.s32.totalorder %v99, 0
    %v101 = vsel %vm100, %v99, 0
    %v102 = vshrl.u32 %v101, 5
    %v103 = vand.u32 %v101, 31
    %v104 = vsub.s32 32, %v103
    %v105 = vshrl.u32 683565275, %v104
    %v106 = vshll.u32 683565275, %v103
    %v107 = vshrl.u32 2475754826, %v104
    %v108 = vor.u32 %v106, %v107
    %v109 = vshll.u32 2475754826, %v103
    %v110 = vshrl.u32 2131351028, %v104
    %v111 = vor.u32 %v109, %v110
    %v112 = vshll.u32 2131351028, %v103
    %v113 = vshrl.u32 2102212464, %v104
    %v114 = vor.u32 %v112, %v113
    %v115 = vshll.u32 2102212464, %v103
    %v116 = vshrl.u32 920167782, %v104
    %v117 = vor.u32 %v115, %v116
    %v118 = vshll.u32 920167782, %v103
    %v119 = vshrl.u32 1326507024, %v104
    %v120 = vor.u32 %v118, %v119
    %vm121 = vcmp.lt.s32.totalorder %v102, 1
    %vm122 = vcmp.lt.s32.totalorder %v102, 2
    %vm123 = vcmp.lt.s32.totalorder %v102, 3
    %vm124 = vcmp.lt.s32.totalorder %v102, 4
    %v125 = vsel %vm121, %v105, %v108
    %v126 = vsel %vm124, %v114, 2102212464
    %v127 = vsel %vm123, %v111, %v126
    %v128 = vsel %vm122, %v125, %v127
    %v129 = vsel %vm121, %v108, %v111
    %v130 = vsel %vm124, %v117, 920167782
    %v131 = vsel %vm123, %v114, %v130
    %v132 = vsel %vm122, %v129, %v131
    %v133 = vsel %vm121, %v111, %v114
    %v134 = vsel %vm124, %v120, 1326507024
    %v135 = vsel %vm123, %v117, %v134
    %v136 = vsel %vm122, %v133, %v135
    %v137 = vshll.u32 %v97, 8
    %v138 = vmul.u32.u64.compose %v137, %v136
    %v139 = vextract.low.u32 %v138
    %v140 = vextract.high.u32 %v138
    %v141 = vmul.u32.u64.compose %v137, %v132
    %v142 = vextract.low.u32 %v141
    %v143 = vextract.high.u32 %v141
    %v144 = vmul.u32 %v137, %v128
    %v145 = vadd.s32 %v140, %v142
    %vm146 = vc.u32 %v140, %v142
    %v147 = vadd.s32 %v143, 1
    %v148 = vsel %vm146, %v147, %v143
    %v149 = vadd.s32 %v144, %v148
    %v150 = vadd.s32 %v149, 536870912
    %v151 = vshrl.u32 %v150, 30
    %v152 = vshll.u32 %v151, 30
    %v153 = vsub.s32 %v149, %v152
    %vm154 = vcmp.lt.s32.totalorder %v153, 0
    %v155 = vsub.s32 0, %v153
    %v156 = vsel %vm154, %v155, %v153
    %v157 = vclz %v156
    %v158 = vsub.s32 %v157, 2
    %vm159 = vcmp.gt.s32.totalorder 0, %v158
    %v160 = vsel %vm159, 0, %v158
    %v161 = vsub.s32 32, %v160
    %v162 = vshll.u32 %v153, %v160
    %v163 = vshrl.u32 %v145, %v161
    %v164 = vor.u32 %v162, %v163
    %v165 = vsub.s32 4294967266, %v160
    %v166 = vadd.s32 %v165, 127
    %v167 = vshll.u32 %v166, 23
    %v168 = vor.u32 4788187, %v167
    %v169 = vand.u32 2147483647, %v168
    %v171 = vcvt.s32.f32 %v164
    %v172 = vmul.f32 %v171, %v169
    %v173 = vxor.u32 %v172, 2147483648
    %v174 = vsel %vm91, %v173, %v172
    %v175 = vsub.s32 4, %v151
    %v176 = vsel %vm91, %v175, %v151
    %v177 = vsel %vm90, %v88, %v174
    %v178 = vsel %vm90, 0, %v176
    %v179 = vcosq.f32.pop %v177
    %v180 = vsinq.f32.pop %v177
    %vm181 = vweird.f32 %v88
    %v182 = vadd.s32 %v178, 3
    %v183 = vand.u32 %v182, 3
    %vm184 = vcmp.lt.s32.totalorder %v183, 2
    %vm185 = vcmp.eq.s32.totalorder %v183, 0
    %v186 = vxor.u32 %v180, 2147483648
    %v187 = vsel %vm185, %v179, %v186
    %vm188 = vcmp.eq.s32.totalorder %v183, 2
    %v189 = vxor.u32 %v179, 2147483648
    %v190 = vsel %vm188, %v189, %v180
    %v191 = vsel %vm184, %v187, %v190
    %v192 = vsel %vm181, nan, %v191
    %193 = vst [vmem:[#allocation7] sm:$0x3] %v192
    // Predicated region
    $region22: #{tpu_custom_call.1} parent=1 // pred_check
      _
    $region23: #{tpu_custom_call.1} parent=1 // pred_check_branch
      %195 = sbr.rel (0) target = $region25
    $region24: #{tpu_custom_call.1} parent=1 // pred_region
      %s197 = ssub.s32 32, 32
      %198 = vsyncadd [#allocation4], %s197
      %s200 = sshll.u32 [#allocation7], 4
      %s201 = int_to_ptr.vmem [resolvable:$true] %s200
      %203 = dma.vmem_to_hbm [thread:$0]  %s201, 32, %s3, [#allocation4]
    $region25: #{tpu_custom_call.1} parent=1 // pred_fallthru
      _
    // Predicated region
    $region26: #{tpu_custom_call.1} parent=1 // pred_check
      _
    $region27: #{tpu_custom_call.1} parent=1 // pred_check_branch
      %205 = sbr.rel (0) target = $region29
    $region28: #{tpu_custom_call.1} parent=1 // pred_region
      %206 = dma.done [#allocation4], 32
    $region29: #{tpu_custom_call.1} parent=1 // pred_fallthru
      _
    %207 = vsyncpa [#allocation3], 1
    %208 = vsyncpa [#allocation6], 1
    %209 = vsyncpa [#allocation4], 1

</llo_original>
